<compile_context>
chip_gen: v7x
topology: tpu7x:2x2x1
jax: 0.10.0
libtpu: 0.0.40
codegen_flags: <defaults>
</compile_context>

<pallas_src>
import jax
import jax.numpy as jnp
from jax.experimental import pallas as pl
from jax.experimental.pallas import tpu as pltpu


# Single-buffer grid-invariant operands (weights / fused biases): their
# index_map is constant so double-buffering only doubles resident VMEM.
_SINGLE_BUF = {"pipeline_mode": pl.Buffered(1)} if hasattr(pl, "Buffered") else {}


def _make_rnn_kernel(num_layers):
    """Fused kernel: num_layers tanh-RNN cells (seq_len=1, h0=0) + linear head."""

    def kernel(*refs):
        # refs layout:
        #   [0]                      x_ref         (TB, I)        f32
        #   [1 + 2l], [2 + 2l]       w_ih_t_l (in_f, H) bf16, b_l (1, H) f32
        #   [1 + 2L]                 w_out_ref     (1, H)   f32  (VMEM)
        #   [2 + 2L]                 b_out_ref     (1,)     f32  (SMEM scalar)
        #   [3 + 2L]                 out_ref       (TB, 1)  f32
        x_ref = refs[0]
        w_out_ref = refs[1 + 2 * num_layers]
        b_out_ref = refs[2 + 2 * num_layers]
        out_ref = refs[3 + 2 * num_layers]

        h = x_ref[...]                               # (TB, in_features_0), f32
        for l in range(num_layers):
            w_ih_t = refs[1 + 2 * l][...]            # (in_features_l, H), bf16
            b = refs[2 + 2 * l][...]                 # (1, H) f32 == b_ih + b_hh
            # Recurrent term dropped: h0 == 0, so h0 @ W_hh^T == 0 exactly.
            # Cast activations to the weight dtype for the bf16-native MXU,
            # accumulate in f32; bias add + tanh stay f32 (v5e-safe).
            acc = jnp.dot(h.astype(w_ih_t.dtype), w_ih_t,
                          preferred_element_type=jnp.float32)
            h = jnp.tanh(acc + b)                    # (TB, H) f32

        # Linear(H, 1) head as VPU mul + lane reduce (keeps the MXU slot free).
        out_ref[...] = (
            jnp.sum(h * w_out_ref[...], axis=-1, keepdims=True) + b_out_ref[0]
        ).astype(out_ref.dtype)

    return kernel


def prepare_params(params, matmul_dtype=jnp.bfloat16):
    """One-time parameter preparation (do NOT re-run per forward call):
    transpose W_ih, fuse b_ih + b_hh, cast matmul weights to the MXU dtype."""
    num_layers = len(params["w_ih"])
    prepared = {"w_ih_t": [], "b": []}
    for l in range(num_layers):
        prepared["w_ih_t"].append(params["w_ih"][l].T.astype(matmul_dtype))
        prepared["b"].append(
            (params["b_ih"][l] + params["b_hh"][l]).reshape(1, -1).astype(jnp.float32)
        )
    prepared["w_out"] = params["w_out"].astype(jnp.float32)      # (1, H), VPU path
    prepared["b_out"] = params["b_out"].reshape(1).astype(jnp.float32)
    return prepared


def _pick_block_batch(batch):
    """Largest batch tile <= 512 (multiple of 8) dividing batch; prefer >= 2
    grid steps so v7x's two TensorCores both get work."""
    if batch % 8 != 0:
        return batch                           # tiny / irregular: one full-batch step
    bb = min(512, batch)
    while batch % bb != 0:
        bb -= 8
    if bb == batch and batch >= 16 and (batch // 2) % 8 == 0:
        bb = batch // 2                        # guarantee >= 2 grid steps (megacore)
    return bb


def _round_up(x, m):
    return ((x + m - 1) // m) * m


def _estimate_vmem_bytes(block_batch, input_size, hidden, num_layers, matmul_dtype):
    """Resident VMEM estimate: single-buffered weights + double-buffered x/out."""
    wbytes = jnp.dtype(matmul_dtype).itemsize

    def tile_bytes(rows, cols, itemsize):
        return _round_up(max(rows, 1), 8) * _round_up(max(cols, 1), 128) * itemsize

    total = 0
    in_f = input_size
    for _ in range(num_layers):
        total += tile_bytes(in_f, hidden, wbytes)        # W_ih^T  (Buffered(1))
        total += tile_bytes(1, hidden, 4)                # fused bias, f32
        in_f = hidden
    total += tile_bytes(1, hidden, 4)                    # w_out row, f32
    total += 2 * tile_bytes(block_batch, input_size, 4)  # x tile (double-buffered)
    total += 2 * tile_bytes(block_batch, 1, 4)           # out tile (double-buffered)
    return total


def rnn_forward(x, prepared, *, block_batch=None):
    """Run the fused RNN forward. x: (B, input_size) f32 -> (B, 1) f32."""
    num_layers = len(prepared["w_ih_t"])
    batch, input_size = x.shape
    hidden = prepared["w_ih_t"][0].shape[1]

    if block_batch is None:
        block_batch = _pick_block_batch(batch)
    assert batch % block_batch == 0, "batch must be divisible by block_batch"
    grid = (batch // block_batch,)

    args = [x]
    in_specs = [pl.BlockSpec((block_batch, input_size), lambda i: (i, 0))]

    for l in range(num_layers):
        w_ih_t = prepared["w_ih_t"][l]                       # (in_f, H) bf16
        b = prepared["b"][l]                                 # (1, H)  f32
        args.append(w_ih_t)
        in_specs.append(pl.BlockSpec(w_ih_t.shape, lambda i: (0, 0), **_SINGLE_BUF))
        args.append(b)
        in_specs.append(pl.BlockSpec(b.shape, lambda i: (0, 0), **_SINGLE_BUF))

    # Head weights: (1, H) f32 row resident in VMEM (broadcast over batch in-kernel).
    args.append(prepared["w_out"])
    in_specs.append(
        pl.BlockSpec(prepared["w_out"].shape, lambda i: (0, 0), **_SINGLE_BUF)
    )
    # Head bias: single scalar in SMEM.
    args.append(prepared["b_out"])
    in_specs.append(
        pl.BlockSpec((1,), lambda i: (0,), memory_space=pltpu.MemorySpace.SMEM)
    )

    out_specs = pl.BlockSpec((block_batch, 1), lambda i: (i, 0))

    vmem_est = _estimate_vmem_bytes(
        block_batch, input_size, hidden, num_layers, prepared["w_ih_t"][0].dtype
    )
    # Explicit scoped-VMEM budget (default is 16-32 MiB); 2x headroom, capped
    # at v7x's 64 MiB physical VMEM so the same config compiles on all chips.
    vmem_limit = int(min(max(2 * vmem_est, 16 * 1024 * 1024), 64 * 1024 * 1024))
    # TODO(synk): if resident bf16 weights ever approach ~half of v7x's 64 MiB
    # (very large H / num_layers), add a layer grid axis to stream one layer's
    # weights per step instead of keeping all layers resident.

    return pl.pallas_call(
        _make_rnn_kernel(num_layers),
        out_shape=jax.ShapeDtypeStruct((batch, 1), jnp.float32),
        grid=grid,
        in_specs=in_specs,
        out_specs=out_specs,
        compiler_params=pltpu.CompilerParams(
            dimension_semantics=("parallel",),
            vmem_limit_bytes=vmem_limit,
        ),
    )(*args)


def init_params(key, input_size, hidden_size, num_layers):
    """Deterministic init matching the PyTorch module's parameter shapes."""
    params = {"w_ih": [], "w_hh": [], "b_ih": [], "b_hh": []}
    k_rnn = 1.0 / jnp.sqrt(hidden_size)
    for l in range(num_layers):
        in_f = input_size if l == 0 else hidden_size
        key, k1, k2, k3, k4 = jax.random.split(key, 5)
        params["w_ih"].append(
            jax.random.uniform(k1, (hidden_size, in_f), jnp.float32, -k_rnn, k_rnn))
        params["w_hh"].append(
            jax.random.uniform(k2, (hidden_size, hidden_size), jnp.float32, -k_rnn, k_rnn))
        params["b_ih"].append(
            jax.random.uniform(k3, (hidden_size,), jnp.float32, -k_rnn, k_rnn))
        params["b_hh"].append(
            jax.random.uniform(k4, (hidden_size,), jnp.float32, -k_rnn, k_rnn))
    k_lin = 1.0 / jnp.sqrt(hidden_size)
    key, k5, k6 = jax.random.split(key, 3)
    params["w_out"] = jax.random.uniform(k5, (1, hidden_size), jnp.float32, -k_lin, k_lin)
    params["b_out"] = jax.random.uniform(k6, (1,), jnp.float32, -k_lin, k_lin)
    return params


def rnn_forward_ref(x, params):
    """Pure-JAX f32 reference (keeps the explicit zero h0 @ W_hh term for fidelity)."""
    num_layers = len(params["w_ih"])
    h = x
    for l in range(num_layers):
        h0 = jnp.zeros((x.shape[0], params["w_hh"][l].shape[0]), jnp.float32)
        h = jnp.tanh(
            h @ params["w_ih"][l].T + params["b_ih"][l]
            + h0 @ params["w_hh"][l].T + params["b_hh"][l]
        )
    return h @ params["w_out"].T + params["b_out"]


if __name__ == "__main__":
    batch, input_size, hidden_size, num_layers = 2, 16, 32, 2

    key = jax.random.PRNGKey(0)
    key, kx = jax.random.split(key)
    x = jax.random.normal(kx, (batch, input_size), dtype=jnp.float32)
    params = init_params(key, input_size, hidden_size, num_layers)

    # One-time parameter preparation (transpose / bias-fuse / bf16 cast).
    prepared = prepare_params(params, matmul_dtype=jnp.bfloat16)

    out = rnn_forward(x, prepared)
    out = jax.block_until_ready(out)

    ref = rnn_forward_ref(x, params)
    assert out.shape == (batch, 1)
    # Looser tolerance: matmul inputs are bf16 (f32 accumulation / activations).
    assert jnp.allclose(out, ref, atol=2e-2, rtol=2e-2)

    print("KERNEL_OK")
</pallas_src>

<mosaic_0001>
module attributes {stable_mosaic.version = 11 : i64} {
  func.func @kernel(%arg0: i32, %arg1: memref<2x16xf32, #tpu.memory_space<vmem>>, %arg2: memref<16x32xbf16, #tpu.memory_space<vmem>>, %arg3: memref<1x32xf32, #tpu.memory_space<vmem>>, %arg4: memref<32x32xbf16, #tpu.memory_space<vmem>>, %arg5: memref<1x32xf32, #tpu.memory_space<vmem>>, %arg6: memref<1x32xf32, #tpu.memory_space<vmem>>, %arg7: memref<1xf32, #tpu.memory_space<smem>>, %arg8: memref<2x1xf32, #tpu.memory_space<vmem>>) attributes {dimension_semantics = [#tpu.dimension_semantics<parallel>], iteration_bounds = array<i64: 1>, scalar_prefetch = 0 : i64, scratch_operands = 0 : i64, tpu.core_type = #tpu.core_type<tc>, window_params = [{transform_indices = @transform_0, window_bounds = array<i64: 2, 16>}, {pipeline_mode = #tpu.pipeline_mode<synchronous>, transform_indices = @transform_1, window_bounds = array<i64: 16, 32>}, {pipeline_mode = #tpu.pipeline_mode<synchronous>, transform_indices = @transform_2, window_bounds = array<i64: 1, 32>}, {pipeline_mode = #tpu.pipeline_mode<synchronous>, transform_indices = @transform_3, window_bounds = array<i64: 32, 32>}, {pipeline_mode = #tpu.pipeline_mode<synchronous>, transform_indices = @transform_4, window_bounds = array<i64: 1, 32>}, {pipeline_mode = #tpu.pipeline_mode<synchronous>, transform_indices = @transform_5, window_bounds = array<i64: 1, 32>}, {transform_indices = @transform_6, window_bounds = array<i64: 1>}, {transform_indices = @transform_7, window_bounds = array<i64: 2, 1>}]} {
    %c0 = arith.constant 0 : index
    %c0_0 = arith.constant 0 : index
    %0 = vector.load %arg1[%c0, %c0_0] : memref<2x16xf32, #tpu.memory_space<vmem>>, vector<2x16xf32>
    %c0_1 = arith.constant 0 : index
    %c0_2 = arith.constant 0 : index
    %1 = vector.load %arg2[%c0_1, %c0_2] : memref<16x32xbf16, #tpu.memory_space<vmem>>, vector<16x32xbf16>
    %c0_3 = arith.constant 0 : index
    %c0_4 = arith.constant 0 : index
    %2 = vector.load %arg3[%c0_3, %c0_4] : memref<1x32xf32, #tpu.memory_space<vmem>>, vector<1x32xf32>
    %3 = arith.truncf %0 : vector<2x16xf32> to vector<2x16xbf16>
    %cst = arith.constant dense<0.000000e+00> : vector<2x32xf32>
    %4 = tpu.matmul %3, %1, %cst {dimension_numbers = #tpu.dot_dimension_numbers<[1], [0], [0], [1], [0, 0, 1, 1], [], []>} : vector<2x16xbf16>, vector<16x32xbf16>, vector<2x32xf32> -> vector<2x32xf32>
    %5 = vector.broadcast %2 : vector<1x32xf32> to vector<2x32xf32>
    %6 = arith.addf %4, %5 : vector<2x32xf32>
    %7 = math.tanh %6 : vector<2x32xf32>
    %c0_5 = arith.constant 0 : index
    %c0_6 = arith.constant 0 : index
    %8 = vector.load %arg4[%c0_5, %c0_6] : memref<32x32xbf16, #tpu.memory_space<vmem>>, vector<32x32xbf16>
    %c0_7 = arith.constant 0 : index
    %c0_8 = arith.constant 0 : index
    %9 = vector.load %arg5[%c0_7, %c0_8] : memref<1x32xf32, #tpu.memory_space<vmem>>, vector<1x32xf32>
    %10 = arith.truncf %7 : vector<2x32xf32> to vector<2x32xbf16>
    %cst_9 = arith.constant dense<0.000000e+00> : vector<2x32xf32>
    %11 = tpu.matmul %10, %8, %cst_9 {dimension_numbers = #tpu.dot_dimension_numbers<[1], [0], [0], [1], [0, 0, 1, 1], [], []>} : vector<2x32xbf16>, vector<32x32xbf16>, vector<2x32xf32> -> vector<2x32xf32>
    %12 = vector.broadcast %9 : vector<1x32xf32> to vector<2x32xf32>
    %13 = arith.addf %11, %12 : vector<2x32xf32>
    %14 = math.tanh %13 : vector<2x32xf32>
    %c0_10 = arith.constant 0 : index
    %c0_11 = arith.constant 0 : index
    %15 = vector.load %arg6[%c0_10, %c0_11] : memref<1x32xf32, #tpu.memory_space<vmem>>, vector<1x32xf32>
    %16 = vector.broadcast %15 : vector<1x32xf32> to vector<2x32xf32>
    %17 = arith.mulf %14, %16 : vector<2x32xf32>
    %cst_12 = arith.constant dense<0.000000e+00> : vector<2xf32>
    %18 = vector.multi_reduction <add>, %17, %cst_12 [1] : vector<2x32xf32> to vector<2xf32>
    %19 = vector.shape_cast %18 : vector<2xf32> to vector<2x1xf32>
    %c0_13 = arith.constant 0 : index
    %20 = memref.load %arg7[%c0_13] : memref<1xf32, #tpu.memory_space<smem>>
    %21 = vector.broadcast %20 : f32 to vector<2x1xf32>
    %22 = arith.addf %19, %21 : vector<2x1xf32>
    %c0_14 = arith.constant 0 : index
    %c0_15 = arith.constant 0 : index
    %23 = vector.load %arg8[%c0_14, %c0_15] : memref<2x1xf32, #tpu.memory_space<vmem>>, vector<2x1xf32>
    tpu.vector_store %arg8[%c0_14, %c0_15], %22 {strides = array<i32>} : memref<2x1xf32, #tpu.memory_space<vmem>>, vector<2x1xf32>,
    return
  }
  func.func @transform_0(%arg0: i32) -> (i32, i32) {
    %c0_i32 = arith.constant 0 : i32
    %c0_i32_0 = arith.constant 0 : i32
    return %arg0, %c0_i32 : i32, i32
  }
  func.func @transform_1(%arg0: i32) -> (i32, i32) {
    %c0_i32 = arith.constant 0 : i32
    %c0_i32_0 = arith.constant 0 : i32
    %c0_i32_1 = arith.constant 0 : i32
    return %c0_i32, %c0_i32_0 : i32, i32
  }
  func.func @transform_2(%arg0: i32) -> (i32, i32) {
    %c0_i32 = arith.constant 0 : i32
    %c0_i32_0 = arith.constant 0 : i32
    %c0_i32_1 = arith.constant 0 : i32
    return %c0_i32, %c0_i32_0 : i32, i32
  }
  func.func @transform_3(%arg0: i32) -> (i32, i32) {
    %c0_i32 = arith.constant 0 : i32
    %c0_i32_0 = arith.constant 0 : i32
    %c0_i32_1 = arith.constant 0 : i32
    return %c0_i32, %c0_i32_0 : i32, i32
  }
  func.func @transform_4(%arg0: i32) -> (i32, i32) {
    %c0_i32 = arith.constant 0 : i32
    %c0_i32_0 = arith.constant 0 : i32
    %c0_i32_1 = arith.constant 0 : i32
    return %c0_i32, %c0_i32_0 : i32, i32
  }
  func.func @transform_5(%arg0: i32) -> (i32, i32) {
    %c0_i32 = arith.constant 0 : i32
    %c0_i32_0 = arith.constant 0 : i32
    %c0_i32_1 = arith.constant 0 : i32
    return %c0_i32, %c0_i32_0 : i32, i32
  }
  func.func @transform_6(%arg0: i32) -> i32 {
    %c0_i32 = arith.constant 0 : i32
    %c0_i32_0 = arith.constant 0 : i32
    return %c0_i32 : i32
  }
  func.func @transform_7(%arg0: i32) -> (i32, i32) {
    %c0_i32 = arith.constant 0 : i32
    %c0_i32_0 = arith.constant 0 : i32
    return %arg0, %c0_i32 : i32, i32
  }
}

</mosaic_0001>

<llo_original>
// kernel: tpu_custom_call.1
$region0: #{tpu_custom_call.1}
  #allocation0 [shape = 'u32[]', space=smem, size = 0x4, offset = 0x4, fixed_abs, tag = 'smem constant byte address 0x4 - core index']
  #allocation1 [shape = 'u32[144,128]{1,0:T(1,128)}', space=vmem, size = 0x12000, scoped, tag = 'internal scratch']
  #allocation2 [shape = 'f32[1]{0:T(128)S(6)}', space=smem, size = 0x200, scoped, tag = 'scoped memory for tpu_custom_call.1']
  %s0 = inlined_call_operand.vmem [shape: f32[2,16], index: 0, kind: input, shape index: {}]
  %s1 = inlined_call_operand.hbm [shape: bf16[16,32], index: 1, kind: input, shape index: {}]
  %s2 = inlined_call_operand.vmem [shape: f32[1,32], index: 2, kind: input, shape index: {}]
  %s3 = inlined_call_operand.hbm [shape: bf16[32,32], index: 3, kind: input, shape index: {}]
  %s4 = inlined_call_operand.vmem [shape: f32[1,32], index: 4, kind: input, shape index: {}]
  %s5 = inlined_call_operand.vmem [shape: f32[1,32], index: 5, kind: input, shape index: {}]
  %s6 = inlined_call_operand.<no memory space> [shape: f32[1], index: 6, kind: input, shape index: {}]
  %s7 = inlined_call_operand.vmem [shape: f32[2,1], index: 7, kind: output, shape index: {}]
  %s8 = sld [smem:[#allocation0]]
  $region46: #{tpu_custom_call.1} parent=0
    _
  %s10 = ssub.s32 1, %s8
  %s11 = scalar_select 0, %s10, %s8
  %12 = sst [smem:[#allocation2]] %s6
  $region1: #{tpu_custom_call.1} parent=0
    #allocation3 [shape = 'u8[4096]{0}', space=vmem, size = 0x1000, scoped, tag = 'input window, operand 1, single buffered']
    #allocation4 [shape = 's32[1]{0}', space=sflag, size = 0x4, scoped, tag = 'scoped memory for tpu_custom_call.1']
    #allocation5 [shape = 'u8[8192]{0}', space=vmem, size = 0x2000, scoped, tag = 'input window, operand 3, single buffered']
    #allocation6 [shape = 's32[1]{0}', space=sflag, size = 0x4, scoped, tag = 'scoped memory for tpu_custom_call.1']
    %13 = vsyncpa [#allocation4], 0
    %14 = vsyncpa [#allocation6], 0
    // Predicated region
    $region2: #{tpu_custom_call.1} parent=1 // pred_check
      _
    $region3: #{tpu_custom_call.1} parent=1 // pred_check_branch
      %16 = sbr.rel (0) target = $region5
    $region4: #{tpu_custom_call.1} parent=1 // pred_region
      _
    $region5: #{tpu_custom_call.1} parent=1 // pred_fallthru
      _
    // Predicated region
    $region6: #{tpu_custom_call.1} parent=1 // pred_check
      _
    $region7: #{tpu_custom_call.1} parent=1 // pred_check_branch
      %18 = sbr.rel (0) target = $region9
    $region8: #{tpu_custom_call.1} parent=1 // pred_region
      %s20 = ssub.s32 128, 128
      %21 = vsyncadd [#allocation4], %s20
      %s22 = sshll.u32 [#allocation3], 4
      %s23 = int_to_ptr.vmem [resolvable:$true] %s22
      %28 = dma.hbm_to_vmem [thread:$0]  %s1, 128, %s23, [#allocation4], 64, 64, 4
    $region9: #{tpu_custom_call.1} parent=1 // pred_fallthru
      _
    // Predicated region
    $region10: #{tpu_custom_call.1} parent=1 // pred_check
      _
    $region11: #{tpu_custom_call.1} parent=1 // pred_check_branch
      %30 = sbr.rel (0) target = $region13
    $region12: #{tpu_custom_call.1} parent=1 // pred_region
      _
    $region13: #{tpu_custom_call.1} parent=1 // pred_fallthru
      _
    // Predicated region
    $region14: #{tpu_custom_call.1} parent=1 // pred_check
      _
    $region15: #{tpu_custom_call.1} parent=1 // pred_check_branch
      %32 = sbr.rel (0) target = $region17
    $region16: #{tpu_custom_call.1} parent=1 // pred_region
      %s34 = ssub.s32 256, 256
      %35 = vsyncadd [#allocation6], %s34
      %s36 = sshll.u32 [#allocation5], 4
      %s37 = int_to_ptr.vmem [resolvable:$true] %s36
      %42 = dma.hbm_to_vmem [thread:$0]  %s3, 256, %s37, [#allocation6], 64, 64, 4
    $region17: #{tpu_custom_call.1} parent=1 // pred_fallthru
      _
    // Predicated region
    $region18: #{tpu_custom_call.1} parent=1 // pred_check
      _
    $region19: #{tpu_custom_call.1} parent=1 // pred_check_branch
      %44 = sbr.rel (0) target = $region21
    $region20: #{tpu_custom_call.1} parent=1 // pred_region
      _
    $region21: #{tpu_custom_call.1} parent=1 // pred_fallthru
      _
    // Predicated region
    $region22: #{tpu_custom_call.1} parent=1 // pred_check
      _
    $region23: #{tpu_custom_call.1} parent=1 // pred_check_branch
      %46 = sbr.rel (0) target = $region25
    $region24: #{tpu_custom_call.1} parent=1 // pred_region
      _
    $region25: #{tpu_custom_call.1} parent=1 // pred_fallthru
      _
    // Predicated region
    $region26: #{tpu_custom_call.1} parent=1 // pred_check
      _
    $region27: #{tpu_custom_call.1} parent=1 // pred_check_branch
      %48 = sbr.rel (0) target = $region29
    $region28: #{tpu_custom_call.1} parent=1 // pred_region
      _
    $region29: #{tpu_custom_call.1} parent=1 // pred_fallthru
      _
    // Predicated region
    $region30: #{tpu_custom_call.1} parent=1 // pred_check
      _
    $region31: #{tpu_custom_call.1} parent=1 // pred_check_branch
      %50 = sbr.rel (0) target = $region33
    $region32: #{tpu_custom_call.1} parent=1 // pred_region
      %51 = dma.done [#allocation4], 128
    $region33: #{tpu_custom_call.1} parent=1 // pred_fallthru
      _
    // Predicated region
    $region34: #{tpu_custom_call.1} parent=1 // pred_check
      _
    $region35: #{tpu_custom_call.1} parent=1 // pred_check_branch
      %53 = sbr.rel (0) target = $region37
    $region36: #{tpu_custom_call.1} parent=1 // pred_region
      %54 = dma.done [#allocation6], 256
    $region37: #{tpu_custom_call.1} parent=1 // pred_fallthru
      _
    %v56 = vld [vmem:[%s0] sm:$0x3]
    %v57 = vld [vmem:[#allocation3] sm:$0xf]
    %v58 = vld [vmem:[#allocation3 + $0x4] sm:$0xf]
    %v59 = vld [vmem:[%s2] sm:$0x1]
    %v60 = vpack.c.bf16 %v56, %v56
    %v62 = vlaneseq
    %v63 = vshrl.u32 %v62, 7
    %v64 = vsub.s32 0, %v63
    %v65 = vrot.slane %v59, %v64
    %v69 = vunpack.c.l.b16 %v57
    %v70 = vunpack.c.l.b16 %v58
    %v71 = vpack.c.b16 %v70, %v69
    %vm73 = vcmask 130048
    %v75 = vsel %vm73, %v60, 0
    %77 = vmatprep.subr.bf16.mxu0 0
    %78 = vmatpush1.bf16.msra.mxu0 %v71
    %79 = vmatprep.subr.bf16.mxu0 0
    %80 = vmatpush1.bf16.msra.mxu0 0
    %81 = vmatprep.subr.bf16.mxu0 0
    %82 = vmatpush1.bf16.msra.mxu0 0
    %83 = vmatprep.subr.bf16.mxu0 0
    %84 = vmatpush1.bf16.msra.mxu0 0
    %85 = vmatprep.subr.bf16.mxu0 0
    %86 = vmatpush1.bf16.msra.mxu0 0
    %87 = vmatprep.subr.bf16.mxu0 0
    %88 = vmatpush1.bf16.msra.mxu0 0
    %89 = vmatprep.subr.bf16.mxu0 0
    %90 = vmatpush1.bf16.msra.mxu0 0
    %91 = vmatprep.subr.bf16.mxu0 0
    %92 = vmatpush1.bf16.msra.mxu0 0
    %93 = vmatprep.subr.bf16.mxu0 0
    %94 = vmatpush1.bf16.msra.mxu0 0
    %95 = vmatprep.subr.bf16.mxu0 0
    %96 = vmatpush1.bf16.msra.mxu0 0
    %97 = vmatprep.subr.bf16.mxu0 0
    %98 = vmatpush1.bf16.msra.mxu0 0
    %99 = vmatprep.subr.bf16.mxu0 0
    %100 = vmatpush1.bf16.msra.mxu0 0
    %101 = vmatprep.subr.bf16.mxu0 0
    %102 = vmatpush1.bf16.msra.mxu0 0
    %103 = vmatprep.subr.bf16.mxu0 0
    %104 = vmatpush1.bf16.msra.mxu0 0
    %105 = vmatprep.subr.bf16.mxu0 0
    %106 = vmatpush1.bf16.msra.mxu0 0
    %107 = vmatprep.subr.bf16.mxu0 0
    %108 = vmatpush1.bf16.msra.mxu0 0
    %109 = vmatprep.mubr.bf16.mxu0 0
    %110 = vmatmul.mubr.bf16.gmra.mrb[0].mxu0 %v75
    %v111 = vpop.f32.mrb[0].mxu0
    %v112 = vadd.f32 %v65, %v111
    %v113 = vpop.f32.mrb[0].mxu0
    %v114 = vpop.f32.mrb[0].mxu0
    %v115 = vpop.f32.mrb[0].mxu0
    %116 = vdwg.mxu0
    %v117 = vtanh.pop %v112
    %v118 = vld [vmem:[#allocation5] sm:$0xf]
    %v119 = vld [vmem:[#allocation5 + $0x4] sm:$0xf]
    %v120 = vld [vmem:[#allocation5 + $0x8] sm:$0xf]
    %v121 = vld [vmem:[#allocation5 + $0xc] sm:$0xf]
    %v122 = vld [vmem:[%s4] sm:$0x1]
    %v123 = vpack.c.bf16 %v117, %v117
    %v125 = vlaneseq
    %v126 = vshrl.u32 %v125, 7
    %v127 = vsub.s32 0, %v126
    %v128 = vrot.slane %v122, %v127
    %v134 = vunpack.c.l.b16 %v118
    %v135 = vunpack.c.l.b16 %v119
    %v136 = vunpack.c.l.b16 %v120
    %v137 = vunpack.c.l.b16 %v121
    %v138 = vpack.c.b16 %v135, %v134
    %v139 = vpack.c.b16 %v137, %v136
    %vm142 = vcmask 261120
    %v144 = vsel %vm142, %v123, 0
    %146 = vmatprep.subr.bf16.mxu0 0
    %147 = vmatpush1.bf16.msra.mxu0 %v138
    %148 = vmatprep.subr.bf16.mxu0 0
    %149 = vmatpush1.bf16.msra.mxu0 %v139
    %150 = vmatprep.subr.bf16.mxu0 0
    %151 = vmatpush1.bf16.msra.mxu0 0
    %152 = vmatprep.subr.bf16.mxu0 0
    %153 = vmatpush1.bf16.msra.mxu0 0
    %154 = vmatprep.subr.bf16.mxu0 0
    %155 = vmatpush1.bf16.msra.mxu0 0
    %156 = vmatprep.subr.bf16.mxu0 0
    %157 = vmatpush1.bf16.msra.mxu0 0
    %158 = vmatprep.subr.bf16.mxu0 0
    %159 = vmatpush1.bf16.msra.mxu0 0
    %160 = vmatprep.subr.bf16.mxu0 0
    %161 = vmatpush1.bf16.msra.mxu0 0
    %162 = vmatprep.subr.bf16.mxu0 0
    %163 = vmatpush1.bf16.msra.mxu0 0
    %164 = vmatprep.subr.bf16.mxu0 0
    %165 = vmatpush1.bf16.msra.mxu0 0
    %166 = vmatprep.subr.bf16.mxu0 0
    %167 = vmatpush1.bf16.msra.mxu0 0
    %168 = vmatprep.subr.bf16.mxu0 0
    %169 = vmatpush1.bf16.msra.mxu0 0
    %170 = vmatprep.subr.bf16.mxu0 0
    %171 = vmatpush1.bf16.msra.mxu0 0
    %172 = vmatprep.subr.bf16.mxu0 0
    %173 = vmatpush1.bf16.msra.mxu0 0
    %174 = vmatprep.subr.bf16.mxu0 0
    %175 = vmatpush1.bf16.msra.mxu0 0
    %176 = vmatprep.subr.bf16.mxu0 0
    %177 = vmatpush1.bf16.msra.mxu0 0
    %178 = vmatprep.mubr.bf16.mxu0 0
    %179 = vmatmul.mubr.bf16.gmra.mrb[0].mxu0 %v144
    %v180 = vpop.f32.mrb[0].mxu0
    %v181 = vadd.f32 %v128, %v180
    %v182 = vpop.f32.mrb[0].mxu0
    %v183 = vpop.f32.mrb[0].mxu0
    %v184 = vpop.f32.mrb[0].mxu0
    %185 = vdwg.mxu0
    %v186 = vtanh.pop %v181
    %v187 = vld [vmem:[%s5] sm:$0x1]
    %v189 = vlaneseq
    %v190 = vshrl.u32 %v189, 7
    %v191 = vsub.s32 0, %v190
    %v192 = vrot.slane %v187, %v191
    %v194 = vmul.f32 %v186, %v192
    %vm195 = vcmask 254976
    %v196 = vsel %vm195, %v194, 0.0
    %197 = vadd.xlane.f32.xlu0 %v196
    %v198 = vpop.xlane.xlu0 %197
    %s199 = sld [smem:[#allocation2]]
    %v200 = vstv %s199
    %v201 = vadd.f32 %v198, %v200
    %vm202 = vcmask 1024
    %203 = vst.msk [vmem:[%s7] sm:$0x3] %vm202, %v201
    // Predicated region
    $region38: #{tpu_custom_call.1} parent=1 // pred_check
      _
    $region39: #{tpu_custom_call.1} parent=1 // pred_check_branch
      %205 = sbr.rel (0) target = $region41
    $region40: #{tpu_custom_call.1} parent=1 // pred_region
      _
    $region41: #{tpu_custom_call.1} parent=1 // pred_fallthru
      _
    // Predicated region
    $region42: #{tpu_custom_call.1} parent=1 // pred_check
      _
    $region43: #{tpu_custom_call.1} parent=1 // pred_check_branch
      %207 = sbr.rel (0) target = $region45
    $region44: #{tpu_custom_call.1} parent=1 // pred_region
      _
    $region45: #{tpu_custom_call.1} parent=1 // pred_fallthru
      _
    %208 = vsyncpa [#allocation4], 1
    %209 = vsyncpa [#allocation6], 1

</llo_original>
